<compile_context>
chip_gen: v7x
topology: tpu7x:2x2x1
jax: 0.10.0
libtpu: 0.0.40
codegen_flags: <defaults>
</compile_context>

<pallas_src>
import functools

import jax
import jax.numpy as jnp
from jax.experimental import pallas as pl
from jax.experimental.pallas import tpu as pltpu

LANE = 128
DEFAULT_BLOCK_ROWS = 512   # 512*128*4B = 256 KiB per input block -> ~1.25 MiB VMEM
                           # total (2 inputs x double-buffer + accumulator);
                           # comfortably inside v5e/v6e/v7x scoped VMEM.


def _berhu_kernel(scal_ref, xhat_ref, x_ref, out_ref, acc_ref, *,
                  rows: int, block_rows: int, scale: float):
    i = pl.program_id(0)

    @pl.when(i == 0)
    def _init():
        acc_ref[...] = jnp.zeros_like(acc_ref)

    phi = scal_ref[0]          # std(X) * threshold
    inv_2phi = scal_ref[1]     # 1 / (2 * phi)
    phi2 = phi * phi

    x = x_ref[...]
    xh = xhat_ref[...]
    diff = jnp.abs(x - xh)
    d2 = diff * diff

    # L1 = -F.threshold(-diff, -phi, 0)                -> diff        where diff <  phi  else 0
    # L2 = (F.threshold(d2-phi^2, 0, -phi^2)+phi^2)/2phi -> d2/(2*phi) where d2   > phi^2 else 0
    # (strict comparisons preserved to match F.threshold boundary semantics)
    l1 = jnp.where(diff < phi, diff, 0.0)
    l2 = jnp.where(d2 > phi2, d2, 0.0) * inv_2phi
    contrib = l1 + l2

    if rows % block_rows != 0:
        # Only the (partial) last tile has out-of-bounds rows; mask them out.
        row_ids = jax.lax.broadcasted_iota(jnp.int32, contrib.shape, 0)
        valid_rows = rows - i * block_rows   # >= block_rows except on last tile
        contrib = jnp.where(row_ids < valid_rows, contrib, 0.0)

    acc_ref[...] += contrib   # lane-parallel accumulation: pure VPU adds

    @pl.when(i == pl.num_programs(0) - 1)
    def _finalize():
        out_ref[0, 0] = jnp.sum(acc_ref[...]) * scale


def berhu_loss(x_hat, x, threshold: float = 0.2, reduction: str = "mean",
               block_rows: int = DEFAULT_BLOCK_ROWS):
    assert x_hat.shape == x.shape, "X_hat and X must have the same shape"
    x = x.astype(jnp.float32)
    x_hat = x_hat.astype(jnp.float32)
    n_valid = int(x.size)

    # --- phi pre-pass (plain XLA; one cheap reduction over X) --------------
    phi = jnp.std(x) * jnp.float32(threshold)   # ddof=0 == torch unbiased=False
    inv_2phi = 1.0 / (2.0 * phi)                # inf/NaN if phi == 0 (same as torch)
    scalars = jnp.stack([phi, inv_2phi]).astype(jnp.float32)

    # --- lane-dense (rows, 128) view of the flattened inputs ---------------
    flat_x = x.reshape(-1)
    flat_xh = x_hat.reshape(-1)
    pad = (-n_valid) % LANE
    if pad:
        # TODO(synk): for large lane-unaligned inputs, pad only the tail tile
        # instead of the whole array; zero padding contributes exactly 0.
        flat_x = jnp.pad(flat_x, (0, pad))
        flat_xh = jnp.pad(flat_xh, (0, pad))
    rows = (n_valid + pad) // LANE
    x2 = flat_x.reshape(rows, LANE)
    xh2 = flat_xh.reshape(rows, LANE)

    block_rows = min(block_rows, rows)          # tiny inputs: single full block
    num_tiles = pl.cdiv(rows, block_rows)
    scale = (1.0 / float(n_valid)) if reduction == "mean" else 1.0

    kernel = functools.partial(_berhu_kernel, rows=rows,
                               block_rows=block_rows, scale=scale)

    out = pl.pallas_call(
        kernel,
        out_shape=jax.ShapeDtypeStruct((1, 1), jnp.float32),
        grid=(num_tiles,),
        in_specs=[
            pl.BlockSpec(memory_space=pltpu.MemorySpace.SMEM),        # [phi, 1/(2phi)]
            pl.BlockSpec((block_rows, LANE), lambda i: (i, 0)),       # X_hat tile
            pl.BlockSpec((block_rows, LANE), lambda i: (i, 0)),       # X tile
        ],
        out_specs=pl.BlockSpec(memory_space=pltpu.MemorySpace.SMEM),  # scalar result
        scratch_shapes=[pltpu.VMEM((block_rows, LANE), jnp.float32)],
        compiler_params=pltpu.CompilerParams(
            dimension_semantics=("arbitrary",)),
    )(scalars, xh2, x2)
    return out[0, 0]


def _berhu_ref(x_hat, x, threshold: float = 0.2, reduction: str = "mean"):
    """Pure-JAX reference mirroring the torch module."""
    diff = jnp.abs(x - x_hat)
    phi = jnp.std(x) * threshold   # ddof=0 == unbiased=False
    l1 = jnp.where(diff < phi, diff, 0.0)
    l2 = jnp.where(diff ** 2 > phi ** 2, diff ** 2, 0.0) / (2.0 * phi)
    loss = l1 + l2
    return jnp.mean(loss) if reduction == "mean" else jnp.sum(loss)


if __name__ == "__main__":
    key = jax.random.PRNGKey(0)
    k1, k2, k3, k4 = jax.random.split(key, 4)

    # Primary test: module-consistent shape (n_samples, img_size, img_size).
    n_samples, img_size = 2, 16
    X = jax.random.normal(k1, (n_samples, img_size, img_size), dtype=jnp.float32)
    X_hat = X + 0.1 * jax.random.normal(k2, X.shape, dtype=jnp.float32)

    loss = jax.block_until_ready(
        berhu_loss(X_hat, X, threshold=0.2, reduction="mean"))
    ref = _berhu_ref(X_hat, X, threshold=0.2, reduction="mean")
    assert jnp.allclose(loss, ref, rtol=1e-5, atol=1e-6), (loss, ref)

    # Secondary test: lane-unaligned size + multi-tile grid with a partial
    # last tile (exercises streaming accumulator + in-kernel row masking).
    Y = jax.random.normal(k3, (5, 24, 24), dtype=jnp.float32)
    Y_hat = Y + 0.3 * jax.random.normal(k4, Y.shape, dtype=jnp.float32)
    loss2 = jax.block_until_ready(
        berhu_loss(Y_hat, Y, threshold=0.2, reduction="sum", block_rows=8))
    ref2 = _berhu_ref(Y_hat, Y, threshold=0.2, reduction="sum")
    assert jnp.allclose(loss2, ref2, rtol=1e-4, atol=1e-5), (loss2, ref2)

    print("KERNEL_OK")
</pallas_src>

<mosaic_0001>
module attributes {stable_mosaic.version = 11 : i64} {
  func.func @_berhu_kernel(%arg0: i32, %arg1: memref<2xf32, #tpu.memory_space<smem>>, %arg2: memref<4x128xf32, #tpu.memory_space<vmem>>, %arg3: memref<4x128xf32, #tpu.memory_space<vmem>>, %arg4: memref<1x1xf32, #tpu.memory_space<smem>>, %arg5: memref<4x128xf32, #tpu.memory_space<vmem>>) attributes {dimension_semantics = [#tpu.dimension_semantics<arbitrary>], iteration_bounds = array<i64: 1>, scalar_prefetch = 0 : i64, scratch_operands = 1 : i64, tpu.core_type = #tpu.core_type<tc>, window_params = [{transform_indices = @transform_0, window_bounds = array<i64: 2>}, {transform_indices = @transform_1, window_bounds = array<i64: 4, 128>}, {transform_indices = @transform_2, window_bounds = array<i64: 4, 128>}, {transform_indices = @transform_3, window_bounds = array<i64: 1, 1>}]} {
    %c0_i32 = arith.constant 0 : i32
    %0 = arith.cmpi eq, %arg0, %c0_i32 : i32
    %1 = arith.extui %0 : i1 to i32
    %c0_i32_0 = arith.constant 0 : i32
    %2 = arith.cmpi ne, %1, %c0_i32_0 : i32
    scf.if %2 {
      %cst_12 = arith.constant 0.000000e+00 : f32
      %28 = vector.broadcast %cst_12 : f32 to vector<4x128xf32>
      %c0_13 = arith.constant 0 : index
      %c0_14 = arith.constant 0 : index
      %29 = vector.load %arg5[%c0_13, %c0_14] : memref<4x128xf32, #tpu.memory_space<vmem>>, vector<4x128xf32>
      tpu.vector_store %arg5[%c0_13, %c0_14], %28 {strides = array<i32>} : memref<4x128xf32, #tpu.memory_space<vmem>>, vector<4x128xf32>,
    } else {
    }
    %c0 = arith.constant 0 : index
    %3 = memref.load %arg1[%c0] : memref<2xf32, #tpu.memory_space<smem>>
    %c1 = arith.constant 1 : index
    %4 = memref.load %arg1[%c1] : memref<2xf32, #tpu.memory_space<smem>>
    %5 = arith.mulf %3, %3 : f32
    %c0_1 = arith.constant 0 : index
    %c0_2 = arith.constant 0 : index
    %6 = vector.load %arg3[%c0_1, %c0_2] : memref<4x128xf32, #tpu.memory_space<vmem>>, vector<4x128xf32>
    %c0_3 = arith.constant 0 : index
    %c0_4 = arith.constant 0 : index
    %7 = vector.load %arg2[%c0_3, %c0_4] : memref<4x128xf32, #tpu.memory_space<vmem>>, vector<4x128xf32>
    %8 = arith.subf %6, %7 : vector<4x128xf32>
    %9 = math.absf %8 : vector<4x128xf32>
    %10 = arith.mulf %9, %9 : vector<4x128xf32>
    %11 = vector.broadcast %3 : f32 to vector<4x128xf32>
    %12 = arith.cmpf olt, %9, %11 : vector<4x128xf32>
    %cst = arith.constant 0.000000e+00 : f32
    %13 = vector.broadcast %cst : f32 to vector<4x128xf32>
    %14 = arith.select %12, %9, %13 : vector<4x128xi1>, vector<4x128xf32>
    %15 = vector.broadcast %5 : f32 to vector<4x128xf32>
    %16 = arith.cmpf ogt, %10, %15 : vector<4x128xf32>
    %cst_5 = arith.constant 0.000000e+00 : f32
    %17 = vector.broadcast %cst_5 : f32 to vector<4x128xf32>
    %18 = arith.select %16, %10, %17 : vector<4x128xi1>, vector<4x128xf32>
    %19 = vector.broadcast %4 : f32 to vector<4x128xf32>
    %20 = arith.mulf %18, %19 : vector<4x128xf32>
    %21 = arith.addf %14, %20 : vector<4x128xf32>
    %c0_6 = arith.constant 0 : index
    %c0_7 = arith.constant 0 : index
    %22 = vector.load %arg5[%c0_6, %c0_7] : memref<4x128xf32, #tpu.memory_space<vmem>>, vector<4x128xf32>
    %23 = arith.addf %22, %21 : vector<4x128xf32>
    %c0_8 = arith.constant 0 : index
    %c0_9 = arith.constant 0 : index
    %24 = vector.load %arg5[%c0_8, %c0_9] : memref<4x128xf32, #tpu.memory_space<vmem>>, vector<4x128xf32>
    tpu.vector_store %arg5[%c0_8, %c0_9], %23 {strides = array<i32>} : memref<4x128xf32, #tpu.memory_space<vmem>>, vector<4x128xf32>,
    %c0_i32_10 = arith.constant 0 : i32
    %25 = arith.cmpi eq, %arg0, %c0_i32_10 : i32
    %26 = arith.extui %25 : i1 to i32
    %c0_i32_11 = arith.constant 0 : i32
    %27 = arith.cmpi ne, %26, %c0_i32_11 : i32
    scf.if %27 {
      %c0_12 = arith.constant 0 : index
      %c0_13 = arith.constant 0 : index
      %28 = vector.load %arg5[%c0_12, %c0_13] : memref<4x128xf32, #tpu.memory_space<vmem>>, vector<4x128xf32>
      %29 = vector.shape_cast %28 : vector<4x128xf32> to vector<1x4x128xf32>
      %cst_14 = arith.constant dense<0.000000e+00> : vector<1xf32>
      %30 = vector.multi_reduction <add>, %29, %cst_14 [1, 2] : vector<1x4x128xf32> to vector<1xf32>
      %31 = vector.shape_cast %30 : vector<1xf32> to vector<1x1x1xf32>
      %32 = vector.extract %31[0, 0, 0] : f32 from vector<1x1x1xf32>
      %cst_15 = arith.constant 0.001953125 : f32
      %33 = arith.mulf %32, %cst_15 : f32
      %c0_16 = arith.constant 0 : index
      %c0_17 = arith.constant 0 : index
      %34 = memref.load %arg4[%c0_16, %c0_17] : memref<1x1xf32, #tpu.memory_space<smem>>
      memref.store %33, %arg4[%c0_16, %c0_17] : memref<1x1xf32, #tpu.memory_space<smem>>
    } else {
    }
    return
  }
  func.func @transform_0(%arg0: i32) -> i32 {
    %c0_i32 = arith.constant 0 : i32
    %c0_i32_0 = arith.constant 0 : i32
    return %c0_i32 : i32
  }
  func.func @transform_1(%arg0: i32) -> (i32, i32) {
    %c0_i32 = arith.constant 0 : i32
    %c0_i32_0 = arith.constant 0 : i32
    return %arg0, %c0_i32 : i32, i32
  }
  func.func @transform_2(%arg0: i32) -> (i32, i32) {
    %c0_i32 = arith.constant 0 : i32
    %c0_i32_0 = arith.constant 0 : i32
    return %arg0, %c0_i32 : i32, i32
  }
  func.func @transform_3(%arg0: i32) -> (i32, i32) {
    %c0_i32 = arith.constant 0 : i32
    %c0_i32_0 = arith.constant 0 : i32
    %c0_i32_1 = arith.constant 0 : i32
    return %c0_i32, %c0_i32_0 : i32, i32
  }
}

</mosaic_0001>

<llo_original>
// kernel: tpu_custom_call.1
$region0: #{tpu_custom_call.1}
  #allocation0 [shape = 'u32[]', space=smem, size = 0x4, offset = 0x4, fixed_abs, tag = 'smem constant byte address 0x4 - core index']
  #allocation1 [shape = 'u32[144,128]{1,0:T(1,128)}', space=vmem, size = 0x12000, scoped, tag = 'internal scratch']
  #allocation2 [shape = 'f32[4,128]{1,0:T(4,128)}', space=vmem, size = 0x800, scoped, tag = 'scratch operand']
  %s0 = inlined_call_operand.hbm [shape: f32[2], index: 0, kind: input, shape index: {}]
  %s1 = inlined_call_operand.hbm [shape: f32[4,128], index: 1, kind: input, shape index: {}]
  %s2 = inlined_call_operand.vmem [shape: f32[4,128], index: 2, kind: input, shape index: {}]
  %s3 = inlined_call_operand.hbm [shape: f32[1,1], index: 3, kind: output, shape index: {}]
  %s4 = sld [smem:[#allocation0]]
  $region38: #{tpu_custom_call.1} parent=0
    _
  %s6 = ssub.s32 1, %s4
  %s7 = scalar_select 0, %s6, %s4
  $region1: #{tpu_custom_call.1} parent=0
    #allocation3 [shape = 'u8[512]{0}', space=smem, size = 0x200, scoped, tag = 'input window, operand 0, single buffered']
    #allocation4 [shape = 's32[1]{0}', space=sflag, size = 0x4, scoped, tag = 'scoped memory for tpu_custom_call.1']
    #allocation5 [shape = 's32[1]{0}', space=sflag, size = 0x4, scoped, tag = 'scoped memory for tpu_custom_call.1']
    #allocation6 [shape = 's32[1]{0}', space=sflag, size = 0x4, scoped, tag = 'scoped memory for tpu_custom_call.1']
    #allocation7 [shape = 'u8[2048]{0}', space=vmem, size = 0x800, scoped, tag = 'input window, operand 1, single buffered']
    #allocation8 [shape = 'u8[512]{0}', space=smem, size = 0x200, scoped, tag = 'output window, operand 0, single buffered']
    %8 = vsyncpa [#allocation5], 0
    %9 = vsyncpa [#allocation4], 0
    %10 = vsyncpa [#allocation6], 0
    // Predicated region
    $region2: #{tpu_custom_call.1} parent=1 // pred_check
      _
    $region3: #{tpu_custom_call.1} parent=1 // pred_check_branch
      %12 = sbr.rel (0) target = $region5
    $region4: #{tpu_custom_call.1} parent=1 // pred_region
      %s14 = ssub.s32 16, 16
      %15 = vsyncadd [#allocation5], %s14
      %18 = dma.hbm_to_smem %s0, 16, [#allocation3], [#allocation5]
    $region5: #{tpu_custom_call.1} parent=1 // pred_fallthru
      _
    // Predicated region
    $region6: #{tpu_custom_call.1} parent=1 // pred_check
      _
    $region7: #{tpu_custom_call.1} parent=1 // pred_check_branch
      %20 = sbr.rel (0) target = $region9
    $region8: #{tpu_custom_call.1} parent=1 // pred_region
      %s22 = ssub.s32 64, 64
      %23 = vsyncadd [#allocation4], %s22
      %s25 = sshll.u32 [#allocation7], 4
      %s26 = int_to_ptr.vmem [resolvable:$true] %s25
      %28 = dma.hbm_to_vmem [thread:$0]  %s1, 64, %s26, [#allocation4]
    $region9: #{tpu_custom_call.1} parent=1 // pred_fallthru
      _
    // Predicated region
    $region10: #{tpu_custom_call.1} parent=1 // pred_check
      _
    $region11: #{tpu_custom_call.1} parent=1 // pred_check_branch
      %30 = sbr.rel (0) target = $region13
    $region12: #{tpu_custom_call.1} parent=1 // pred_region
      _
    $region13: #{tpu_custom_call.1} parent=1 // pred_fallthru
      _
    // Predicated region
    $region14: #{tpu_custom_call.1} parent=1 // pred_check
      _
    $region15: #{tpu_custom_call.1} parent=1 // pred_check_branch
      %32 = sbr.rel (0) target = $region17
    $region16: #{tpu_custom_call.1} parent=1 // pred_region
      %33 = dma.done [#allocation5], 16
    $region17: #{tpu_custom_call.1} parent=1 // pred_fallthru
      _
    // Predicated region
    $region18: #{tpu_custom_call.1} parent=1 // pred_check
      _
    $region19: #{tpu_custom_call.1} parent=1 // pred_check_branch
      %35 = sbr.rel (0) target = $region21
    $region20: #{tpu_custom_call.1} parent=1 // pred_region
      %36 = dma.done [#allocation4], 64
    $region21: #{tpu_custom_call.1} parent=1 // pred_fallthru
      _
    %37 = sfence
    %p38 = scmp.eq.s32.totalorder 0, 0
    // Predicated region
    $region22: #{tpu_custom_call.1} parent=1 // pred_check
      %p39 = pneg %p38
    $region23: #{tpu_custom_call.1} parent=1 // pred_check_branch
      %41 = sbr.rel (%p39) target = $region25
    $region24: #{tpu_custom_call.1} parent=1 // pred_region
      %42 = vst [vmem:[#allocation2] sm:$0xf] 0.0
    $region25: #{tpu_custom_call.1} parent=1 // pred_fallthru
      _
    %s43 = sld [smem:[#allocation3]]
    %s44 = sld [smem:[#allocation3 + $0x1]]
    %s45 = smul.f32 %s43, %s43
    %v46 = vld [vmem:[%s2] sm:$0xf]
    %v47 = vld [vmem:[#allocation7] sm:$0xf]
    %v48 = vsub.f32 %v46, %v47
    %v49 = vand.u32 2147483647, %v48
    %v50 = vmul.f32 %v49, %v49
    %v51 = vstv %s43
    %vm52 = vcmp.lt.f32.partialorder %v49, %v51
    %v53 = vsel %vm52, %v49, 0.0
    %v54 = vstv %s45
    %vm55 = vcmp.gt.f32.partialorder %v50, %v54
    %v56 = vsel %vm55, %v50, 0.0
    %v57 = vstv %s44
    %v58 = vmul.f32 %v56, %v57
    %v59 = vadd.f32 %v53, %v58
    %v60 = vld [vmem:[#allocation2] sm:$0xf]
    %v61 = vadd.f32 %v60, %v59
    %62 = vst [vmem:[#allocation2] sm:$0xf] %v61
    // Predicated region
    $region26: #{tpu_custom_call.1} parent=1 // pred_check
      %p63 = pneg %p38
    $region27: #{tpu_custom_call.1} parent=1 // pred_check_branch
      %65 = sbr.rel (%p63) target = $region29
    $region28: #{tpu_custom_call.1} parent=1 // pred_region
      %v66 = vld [vmem:[#allocation2] sm:$0xf]
      %vm67 = vcmask 1043456
      %v68 = vsel %vm67, %v66, 0.0
      %69 = vadd.xlane.f32.xlu0 %v68
      %v70 = vpop.xlane.xlu0 %69
      %v71 = vrot.slane %v70, 4
      %v72 = vadd.f32 %v70, %v71
      %v73 = vrot.slane %v72, 2
      %v74 = vadd.f32 %v72, %v73
      %v75 = vrot.slane %v74, 1
      %v76 = vadd.f32 %v74, %v75
      %s77 = vtos %v76
      %s78 = smul.f32 %s77, 0.001953125
      %s79 = scalar_lea.smem [#allocation8], 0
      %80 = sst [smem:[%s79]] %s78
    $region29: #{tpu_custom_call.1} parent=1 // pred_fallthru
      _
    // Predicated region
    $region30: #{tpu_custom_call.1} parent=1 // pred_check
      _
    $region31: #{tpu_custom_call.1} parent=1 // pred_check_branch
      %82 = sbr.rel (0) target = $region33
    $region32: #{tpu_custom_call.1} parent=1 // pred_region
      %s84 = ssub.s32 16, 16
      %85 = vsyncadd [#allocation6], %s84
      %88 = dma.smem_to_hbm [#allocation8], 16, %s3, [#allocation6]
    $region33: #{tpu_custom_call.1} parent=1 // pred_fallthru
      _
    // Predicated region
    $region34: #{tpu_custom_call.1} parent=1 // pred_check
      _
    $region35: #{tpu_custom_call.1} parent=1 // pred_check_branch
      %90 = sbr.rel (0) target = $region37
    $region36: #{tpu_custom_call.1} parent=1 // pred_region
      %91 = dma.done [#allocation6], 16
    $region37: #{tpu_custom_call.1} parent=1 // pred_fallthru
      _
    %92 = sfence
    %93 = vsyncpa [#allocation4], 1
    %94 = vsyncpa [#allocation5], 1
    %95 = vsyncpa [#allocation6], 1

</llo_original>
